<compile_context>
chip_gen: v5e
topology: v5e:2x2
jax: 0.10.0
libtpu: 0.0.40
codegen_flags: <defaults>
</compile_context>

<pallas_src>
import jax
import jax.numpy as jnp
from jax.experimental import pallas as pl
from jax.experimental.pallas import tpu as pltpu

H1 = 128       # fc1 output width (already lane-dense)
H2 = 64        # real fc2 width
H2P = 128      # fc2 output width, padded 64 -> 128
OUTP = 128     # fc3 output width, padded 2 -> 128
OUT_DIM = 2    # real logit count
_MAX_TK = 2048  # max fc1 K-tile (VMEM-friendly on all generations)


def _mlp_kernel(x_ref, w1_ref, b1_ref, w2_ref, b2_ref, w3_ref, b3_ref,
                o_ref, acc_ref):
    k = pl.program_id(1)

    @pl.when(k == 0)
    def _init():
        acc_ref[...] = jnp.zeros_like(acc_ref)

    # fc1 partial product for this K tile (in-kernel f32 -> bf16 cast of x,
    # f32 accumulation on the MXU).
    x = x_ref[...].astype(jnp.bfloat16)                       # (tb, tk)
    acc_ref[...] += jnp.dot(x, w1_ref[...],
                            preferred_element_type=jnp.float32)

    @pl.when(k == pl.num_programs(1) - 1)
    def _finish():
        h1 = jnp.maximum(acc_ref[...] + b1_ref[...], 0.0)      # (tb, 128) f32
        h1 = h1.astype(jnp.bfloat16)

        # fc2 + relu (padded to 128 cols; pad cols are exactly zero)
        h2 = jnp.dot(h1, w2_ref[...], preferred_element_type=jnp.float32)
        h2 = jnp.maximum(h2 + b2_ref[...], 0.0).astype(jnp.bfloat16)

        # fc3 (padded to 128 cols; only first 2 are real)
        h3 = jnp.dot(h2, w3_ref[...], preferred_element_type=jnp.float32)
        o_ref[...] = (h3 + b3_ref[...]).astype(o_ref.dtype)    # bf16 slab


def prepare_params(params):
    """One-time bf16 cast + zero-padding of weights (hoisted out of forward).

    params: dict of w1,b1,w2,b2,w3,b3 with w* stored (in_features, out_features)
    (i.e. PyTorch Linear weight transposed)."""
    bf = jnp.bfloat16
    w1 = params["w1"].astype(bf)                                     # (D, 128)
    b1 = params["b1"].reshape(1, H1).astype(jnp.float32)

    w2 = jnp.zeros((H1, H2P), bf).at[:, :H2].set(params["w2"].astype(bf))
    b2 = jnp.zeros((1, H2P), jnp.float32).at[:, :H2].set(
        params["b2"].astype(jnp.float32))

    w3 = jnp.zeros((H2P, OUTP), bf).at[:H2, :OUT_DIM].set(
        params["w3"].astype(bf))
    b3 = jnp.zeros((1, OUTP), jnp.float32).at[:, :OUT_DIM].set(
        params["b3"].astype(jnp.float32))
    return {"w1": w1, "b1": b1, "w2": w2, "b2": b2, "w3": w3, "b3": b3}


def _vmem_limit_bytes():
    try:
        cap = pltpu.get_tpu_info().vmem_capacity_bytes
    except Exception:
        cap = 64 << 20  # conservative (v7x per-TC)
    # ~96 MiB on 128 MiB parts (v5e/v6e), ~48 MiB on 64 MiB/TC parts (v7x).
    return min(int(cap * 3 // 4), 96 << 20)


def _pick_tile_k(D):
    if D <= _MAX_TK:
        return D
    for cand in (2048, 1024, 512, 256, 128):
        if D % cand == 0:
            return cand
    # TODO(synk): zero-pad D to a multiple of 128 for huge, non-aligned inputs.
    return D


def _pick_tile_b(B, tk, vmem_limit):
    budget = int(vmem_limit * 0.7)  # headroom for compiler scratch
    tb = 16
    for cand in (2048, 1024, 512, 256, 128, 64, 32, 16):
        need = (2 * cand * tk * 4        # x tile (f32, double-buffered)
                + 2 * tk * H1 * 2        # W1 tile (bf16, double-buffered)
                + cand * H1 * 4          # f32 accumulator scratch
                + 2 * cand * OUTP * 2    # output tile (bf16, double-buffered)
                + 4 * H1 * H2P * 4)      # W2/W3/biases slack
        if need <= budget:
            tb = cand
            break
    tb = min(tb, B)
    if tb < B:
        tb = max(16, (tb // 16) * 16)    # bf16 packs 2 rows per sublane
    return tb


def maldet_forward(x, prepared, *, tile_b=None, tile_k=None):
    """x: (B, input_size) float32.  prepared: output of prepare_params()."""
    B, D = x.shape
    assert prepared["w1"].shape[0] == D

    vmem_limit = _vmem_limit_bytes()
    tk = tile_k if tile_k is not None else _pick_tile_k(D)
    tb = tile_b if tile_b is not None else _pick_tile_b(B, tk, vmem_limit)
    tb = min(tb, B)
    if tb < B:
        tb = max(16, (tb // 16) * 16)

    grid = (pl.cdiv(B, tb), pl.cdiv(D, tk))

    out_padded = pl.pallas_call(
        _mlp_kernel,
        out_shape=jax.ShapeDtypeStruct((B, OUTP), jnp.bfloat16),
        grid_spec=pltpu.PrefetchScalarGridSpec(
            num_scalar_prefetch=0,
            grid=grid,
            in_specs=[
                pl.BlockSpec((tb, tk), lambda i, k: (i, k)),     # x tile (f32)
                pl.BlockSpec((tk, H1), lambda i, k: (k, 0)),     # W1 K-tile
                pl.BlockSpec((1, H1), lambda i, k: (0, 0)),      # b1
                pl.BlockSpec((H1, H2P), lambda i, k: (0, 0)),    # W2 (padded)
                pl.BlockSpec((1, H2P), lambda i, k: (0, 0)),     # b2
                pl.BlockSpec((H2P, OUTP), lambda i, k: (0, 0)),  # W3 (padded)
                pl.BlockSpec((1, OUTP), lambda i, k: (0, 0)),    # b3
            ],
            out_specs=pl.BlockSpec((tb, OUTP), lambda i, k: (i, 0)),
            scratch_shapes=[pltpu.VMEM((tb, H1), jnp.float32)],  # fc1 acc
        ),
        compiler_params=pltpu.CompilerParams(
            dimension_semantics=("parallel", "arbitrary"),
            vmem_limit_bytes=vmem_limit,
        ),
    )(x, prepared["w1"], prepared["b1"], prepared["w2"], prepared["b2"],
      prepared["w3"], prepared["b3"])

    # slice the real logits out of the lane-dense bf16 slab, upcast in wrapper
    return out_padded[:, :OUT_DIM].astype(x.dtype)


def init_params(key, input_size):
    """Deterministic synthetic parameters matching MalDetModel's shapes."""
    k1, k2, k3, k4, k5, k6 = jax.random.split(key, 6)
    # stored as (in_features, out_features) for x @ W
    w1 = jax.random.normal(k1, (input_size, 128), jnp.float32) * 0.05
    b1 = jax.random.normal(k2, (128,), jnp.float32) * 0.05
    w2 = jax.random.normal(k3, (128, 64), jnp.float32) * 0.05
    b2 = jax.random.normal(k4, (64,), jnp.float32) * 0.05
    w3 = jax.random.normal(k5, (64, 2), jnp.float32) * 0.05
    b3 = jax.random.normal(k6, (2,), jnp.float32) * 0.05
    return {"w1": w1, "b1": b1, "w2": w2, "b2": b2, "w3": w3, "b3": b3}


def reference_forward_f32(x, p):
    h = jnp.maximum(x @ p["w1"] + p["b1"], 0.0)
    h = jnp.maximum(h @ p["w2"] + p["b2"], 0.0)
    return h @ p["w3"] + p["b3"]


def reference_forward_bf16(x, p):
    """Same dtype path as the kernel (bf16 operands, f32 accumulation)."""
    bf = jnp.bfloat16
    h = jnp.dot(x.astype(bf), p["w1"].astype(bf),
                preferred_element_type=jnp.float32) + p["b1"]
    h = jnp.maximum(h, 0.0).astype(bf)
    h = jnp.dot(h, p["w2"].astype(bf),
                preferred_element_type=jnp.float32) + p["b2"]
    h = jnp.maximum(h, 0.0).astype(bf)
    out = jnp.dot(h, p["w3"].astype(bf),
                  preferred_element_type=jnp.float32) + p["b3"]
    return out.astype(bf).astype(jnp.float32)   # match kernel's bf16 writeback


def _check(out, x, params):
    ref_bf = reference_forward_bf16(x, params)
    assert jnp.allclose(out, ref_bf, atol=1e-2, rtol=1e-2), (
        float(jnp.max(jnp.abs(out - ref_bf))))
    ref_f32 = reference_forward_f32(x, params)
    assert jnp.allclose(out, ref_f32, atol=5e-2, rtol=5e-2), (
        float(jnp.max(jnp.abs(out - ref_f32))))


if __name__ == "__main__":
    key = jax.random.PRNGKey(0)
    kx, kp, kx2, kp2 = jax.random.split(key, 4)

    # Case 1: small, single-tile.
    batch, input_size = 8, 32
    x = jax.random.normal(kx, (batch, input_size), jnp.float32)
    params = init_params(kp, input_size)
    prepared = prepare_params(params)
    out = jax.block_until_ready(maldet_forward(x, prepared))
    assert out.shape == (batch, OUT_DIM)
    _check(out, x, params)

    # Case 2: multiple / partial batch tiles (grid loop + masked final block).
    batch2, input_size2 = 40, 64
    x2 = jax.random.normal(kx2, (batch2, input_size2), jnp.float32)
    params2 = init_params(kp2, input_size2)
    prepared2 = prepare_params(params2)
    out2 = jax.block_until_ready(maldet_forward(x2, prepared2, tile_b=16))
    assert out2.shape == (batch2, OUT_DIM)
    _check(out2, x2, params2)

    print("KERNEL_OK")
</pallas_src>

<mosaic_0001>
module attributes {stable_mosaic.version = 11 : i64} {
  func.func @_mlp_kernel(%arg0: i32, %arg1: i32, %arg2: memref<8x32xf32, #tpu.memory_space<vmem>>, %arg3: memref<32x128xbf16, #tpu.memory_space<vmem>>, %arg4: memref<1x128xf32, #tpu.memory_space<vmem>>, %arg5: memref<128x128xbf16, #tpu.memory_space<vmem>>, %arg6: memref<1x128xf32, #tpu.memory_space<vmem>>, %arg7: memref<128x128xbf16, #tpu.memory_space<vmem>>, %arg8: memref<1x128xf32, #tpu.memory_space<vmem>>, %arg9: memref<8x128xbf16, #tpu.memory_space<vmem>>, %arg10: memref<8x128xf32, #tpu.memory_space<vmem>>) attributes {dimension_semantics = [#tpu.dimension_semantics<parallel>, #tpu.dimension_semantics<arbitrary>], iteration_bounds = array<i64: 1, 1>, scalar_prefetch = 0 : i64, scratch_operands = 1 : i64, tpu.core_type = #tpu.core_type<tc>, window_params = [{transform_indices = @transform_0, window_bounds = array<i64: 8, 32>}, {transform_indices = @transform_1, window_bounds = array<i64: 32, 128>}, {pipeline_mode = #tpu.pipeline_mode<synchronous>, transform_indices = @transform_2, window_bounds = array<i64: 1, 128>}, {pipeline_mode = #tpu.pipeline_mode<synchronous>, transform_indices = @transform_3, window_bounds = array<i64: 128, 128>}, {pipeline_mode = #tpu.pipeline_mode<synchronous>, transform_indices = @transform_4, window_bounds = array<i64: 1, 128>}, {pipeline_mode = #tpu.pipeline_mode<synchronous>, transform_indices = @transform_5, window_bounds = array<i64: 128, 128>}, {pipeline_mode = #tpu.pipeline_mode<synchronous>, transform_indices = @transform_6, window_bounds = array<i64: 1, 128>}, {transform_indices = @transform_7, window_bounds = array<i64: 8, 128>}]} {
    %c0_i32 = arith.constant 0 : i32
    %0 = arith.cmpi eq, %arg1, %c0_i32 : i32
    %1 = arith.extui %0 : i1 to i32
    %c0_i32_0 = arith.constant 0 : i32
    %2 = arith.cmpi ne, %1, %c0_i32_0 : i32
    scf.if %2 {
      %cst_10 = arith.constant 0.000000e+00 : f32
      %13 = vector.broadcast %cst_10 : f32 to vector<8x128xf32>
      %c0_11 = arith.constant 0 : index
      %c0_12 = arith.constant 0 : index
      %14 = vector.load %arg10[%c0_11, %c0_12] : memref<8x128xf32, #tpu.memory_space<vmem>>, vector<8x128xf32>
      tpu.vector_store %arg10[%c0_11, %c0_12], %13 {strides = array<i32>} : memref<8x128xf32, #tpu.memory_space<vmem>>, vector<8x128xf32>,
    } else {
    }
    %c0 = arith.constant 0 : index
    %c0_1 = arith.constant 0 : index
    %3 = vector.load %arg2[%c0, %c0_1] : memref<8x32xf32, #tpu.memory_space<vmem>>, vector<8x32xf32>
    %4 = arith.truncf %3 : vector<8x32xf32> to vector<8x32xbf16>
    %c0_2 = arith.constant 0 : index
    %c0_3 = arith.constant 0 : index
    %5 = vector.load %arg10[%c0_2, %c0_3] : memref<8x128xf32, #tpu.memory_space<vmem>>, vector<8x128xf32>
    %c0_4 = arith.constant 0 : index
    %c0_5 = arith.constant 0 : index
    %6 = vector.load %arg3[%c0_4, %c0_5] : memref<32x128xbf16, #tpu.memory_space<vmem>>, vector<32x128xbf16>
    %cst = arith.constant dense<0.000000e+00> : vector<8x128xf32>
    %7 = tpu.matmul %4, %6, %cst {dimension_numbers = #tpu.dot_dimension_numbers<[1], [0], [0], [1], [0, 0, 1, 1], [], []>} : vector<8x32xbf16>, vector<32x128xbf16>, vector<8x128xf32> -> vector<8x128xf32>
    %8 = arith.addf %5, %7 : vector<8x128xf32>
    %c0_6 = arith.constant 0 : index
    %c0_7 = arith.constant 0 : index
    %9 = vector.load %arg10[%c0_6, %c0_7] : memref<8x128xf32, #tpu.memory_space<vmem>>, vector<8x128xf32>
    tpu.vector_store %arg10[%c0_6, %c0_7], %8 {strides = array<i32>} : memref<8x128xf32, #tpu.memory_space<vmem>>, vector<8x128xf32>,
    %c0_i32_8 = arith.constant 0 : i32
    %10 = arith.cmpi eq, %arg1, %c0_i32_8 : i32
    %11 = arith.extui %10 : i1 to i32
    %c0_i32_9 = arith.constant 0 : i32
    %12 = arith.cmpi ne, %11, %c0_i32_9 : i32
    scf.if %12 {
      %c0_10 = arith.constant 0 : index
      %c0_11 = arith.constant 0 : index
      %13 = vector.load %arg10[%c0_10, %c0_11] : memref<8x128xf32, #tpu.memory_space<vmem>>, vector<8x128xf32>
      %c0_12 = arith.constant 0 : index
      %c0_13 = arith.constant 0 : index
      %14 = vector.load %arg4[%c0_12, %c0_13] : memref<1x128xf32, #tpu.memory_space<vmem>>, vector<1x128xf32>
      %15 = vector.broadcast %14 : vector<1x128xf32> to vector<8x128xf32>
      %16 = arith.addf %13, %15 : vector<8x128xf32>
      %cst_14 = arith.constant 0.000000e+00 : f32
      %17 = vector.broadcast %cst_14 : f32 to vector<8x128xf32>
      %18 = arith.maximumf %16, %17 : vector<8x128xf32>
      %19 = arith.truncf %18 : vector<8x128xf32> to vector<8x128xbf16>
      %c0_15 = arith.constant 0 : index
      %c0_16 = arith.constant 0 : index
      %20 = vector.load %arg5[%c0_15, %c0_16] : memref<128x128xbf16, #tpu.memory_space<vmem>>, vector<128x128xbf16>
      %cst_17 = arith.constant dense<0.000000e+00> : vector<8x128xf32>
      %21 = tpu.matmul %19, %20, %cst_17 {dimension_numbers = #tpu.dot_dimension_numbers<[1], [0], [0], [1], [0, 0, 1, 1], [], []>} : vector<8x128xbf16>, vector<128x128xbf16>, vector<8x128xf32> -> vector<8x128xf32>
      %c0_18 = arith.constant 0 : index
      %c0_19 = arith.constant 0 : index
      %22 = vector.load %arg6[%c0_18, %c0_19] : memref<1x128xf32, #tpu.memory_space<vmem>>, vector<1x128xf32>
      %23 = vector.broadcast %22 : vector<1x128xf32> to vector<8x128xf32>
      %24 = arith.addf %21, %23 : vector<8x128xf32>
      %cst_20 = arith.constant 0.000000e+00 : f32
      %25 = vector.broadcast %cst_20 : f32 to vector<8x128xf32>
      %26 = arith.maximumf %24, %25 : vector<8x128xf32>
      %27 = arith.truncf %26 : vector<8x128xf32> to vector<8x128xbf16>
      %c0_21 = arith.constant 0 : index
      %c0_22 = arith.constant 0 : index
      %28 = vector.load %arg7[%c0_21, %c0_22] : memref<128x128xbf16, #tpu.memory_space<vmem>>, vector<128x128xbf16>
      %cst_23 = arith.constant dense<0.000000e+00> : vector<8x128xf32>
      %29 = tpu.matmul %27, %28, %cst_23 {dimension_numbers = #tpu.dot_dimension_numbers<[1], [0], [0], [1], [0, 0, 1, 1], [], []>} : vector<8x128xbf16>, vector<128x128xbf16>, vector<8x128xf32> -> vector<8x128xf32>
      %c0_24 = arith.constant 0 : index
      %c0_25 = arith.constant 0 : index
      %30 = vector.load %arg8[%c0_24, %c0_25] : memref<1x128xf32, #tpu.memory_space<vmem>>, vector<1x128xf32>
      %31 = vector.broadcast %30 : vector<1x128xf32> to vector<8x128xf32>
      %32 = arith.addf %29, %31 : vector<8x128xf32>
      %33 = arith.truncf %32 : vector<8x128xf32> to vector<8x128xbf16>
      %c0_26 = arith.constant 0 : index
      %c0_27 = arith.constant 0 : index
      %34 = vector.load %arg9[%c0_26, %c0_27] : memref<8x128xbf16, #tpu.memory_space<vmem>>, vector<8x128xbf16>
      tpu.vector_store %arg9[%c0_26, %c0_27], %33 {strides = array<i32>} : memref<8x128xbf16, #tpu.memory_space<vmem>>, vector<8x128xbf16>,
    } else {
    }
    return
  }
  func.func @transform_0(%arg0: i32, %arg1: i32) -> (i32, i32) {
    %c0_i32 = arith.constant 0 : i32
    return %arg0, %arg1 : i32, i32
  }
  func.func @transform_1(%arg0: i32, %arg1: i32) -> (i32, i32) {
    %c0_i32 = arith.constant 0 : i32
    %c0_i32_0 = arith.constant 0 : i32
    return %arg1, %c0_i32 : i32, i32
  }
  func.func @transform_2(%arg0: i32, %arg1: i32) -> (i32, i32) {
    %c0_i32 = arith.constant 0 : i32
    %c0_i32_0 = arith.constant 0 : i32
    %c0_i32_1 = arith.constant 0 : i32
    return %c0_i32, %c0_i32_0 : i32, i32
  }
  func.func @transform_3(%arg0: i32, %arg1: i32) -> (i32, i32) {
    %c0_i32 = arith.constant 0 : i32
    %c0_i32_0 = arith.constant 0 : i32
    %c0_i32_1 = arith.constant 0 : i32
    return %c0_i32, %c0_i32_0 : i32, i32
  }
  func.func @transform_4(%arg0: i32, %arg1: i32) -> (i32, i32) {
    %c0_i32 = arith.constant 0 : i32
    %c0_i32_0 = arith.constant 0 : i32
    %c0_i32_1 = arith.constant 0 : i32
    return %c0_i32, %c0_i32_0 : i32, i32
  }
  func.func @transform_5(%arg0: i32, %arg1: i32) -> (i32, i32) {
    %c0_i32 = arith.constant 0 : i32
    %c0_i32_0 = arith.constant 0 : i32
    %c0_i32_1 = arith.constant 0 : i32
    return %c0_i32, %c0_i32_0 : i32, i32
  }
  func.func @transform_6(%arg0: i32, %arg1: i32) -> (i32, i32) {
    %c0_i32 = arith.constant 0 : i32
    %c0_i32_0 = arith.constant 0 : i32
    %c0_i32_1 = arith.constant 0 : i32
    return %c0_i32, %c0_i32_0 : i32, i32
  }
  func.func @transform_7(%arg0: i32, %arg1: i32) -> (i32, i32) {
    %c0_i32 = arith.constant 0 : i32
    %c0_i32_0 = arith.constant 0 : i32
    return %arg0, %c0_i32 : i32, i32
  }
}

</mosaic_0001>

<llo_original>
// kernel: tpu_custom_call.1
$region0: #{tpu_custom_call.1}
  #allocation0 [shape = 'u32[]', space=smem, size = 0x4, offset = 0x4, fixed_abs, tag = 'smem constant byte address 0x4 - core index']
  #allocation1 [shape = 'u32[72,128]{1,0:T(1,128)}', space=vmem, size = 0x9000, scoped, tag = 'internal scratch']
  #allocation2 [shape = 'f32[8,128]{1,0:T(8,128)}', space=vmem, size = 0x1000, scoped, tag = 'scratch operand']
  %s0 = inlined_call_operand.hbm [shape: f32[8,32], index: 0, kind: input, shape index: {}]
  %s1 = inlined_call_operand.hbm [shape: bf16[32,128], index: 1, kind: input, shape index: {}]
  %s2 = inlined_call_operand.vmem [shape: f32[1,128], index: 2, kind: input, shape index: {}]
  %s3 = inlined_call_operand.hbm [shape: bf16[128,128], index: 3, kind: input, shape index: {}]
  %s4 = inlined_call_operand.vmem [shape: f32[1,128], index: 4, kind: input, shape index: {}]
  %s5 = inlined_call_operand.hbm [shape: bf16[128,128], index: 5, kind: input, shape index: {}]
  %s6 = inlined_call_operand.vmem [shape: f32[1,128], index: 6, kind: input, shape index: {}]
  %s7 = inlined_call_operand.hbm [shape: bf16[8,128], index: 7, kind: output, shape index: {}]
  %s8 = sld [smem:[#allocation0]]
  $region62: #{tpu_custom_call.1} parent=0
    _
  %s10 = ssub.s32 1, %s8
  %s11 = scalar_select 0, %s10, %s8
  $region1: #{tpu_custom_call.1} parent=0
    #allocation3 [shape = 'u8[4096]{0}', space=vmem, size = 0x1000, scoped, tag = 'input window, operand 0, single buffered']
    #allocation4 [shape = 's32[1]{0}', space=sflag, size = 0x4, scoped, tag = 'scoped memory for tpu_custom_call.1']
    #allocation5 [shape = 's32[1]{0}', space=sflag, size = 0x4, scoped, tag = 'scoped memory for tpu_custom_call.1']
    #allocation6 [shape = 'u8[8192]{0}', space=vmem, size = 0x2000, scoped, tag = 'input window, operand 1, single buffered']
    #allocation7 [shape = 's32[1]{0}', space=sflag, size = 0x4, scoped, tag = 'scoped memory for tpu_custom_call.1']
    #allocation8 [shape = 'u8[32768]{0}', space=vmem, size = 0x8000, scoped, tag = 'input window, operand 3, single buffered']
    #allocation9 [shape = 'u8[32768]{0}', space=vmem, size = 0x8000, scoped, tag = 'input window, operand 5, single buffered']
    #allocation10 [shape = 's32[1]{0}', space=sflag, size = 0x4, scoped, tag = 'scoped memory for tpu_custom_call.1']
    #allocation11 [shape = 'u8[2048]{0}', space=vmem, size = 0x800, scoped, tag = 'output window, operand 0, single buffered']
    %12 = vsyncpa [#allocation4], 0
    %13 = vsyncpa [#allocation7], 0
    %14 = vsyncpa [#allocation10], 0
    %15 = vsyncpa [#allocation5], 0
    // Predicated region
    $region2: #{tpu_custom_call.1} parent=1 // pred_check
      _
    $region3: #{tpu_custom_call.1} parent=1 // pred_check_branch
      %17 = sbr.rel (0) target = $region5
    $region4: #{tpu_custom_call.1} parent=1 // pred_region
      %19 = vsyncadd [#allocation4], 0
      %s21 = sshll.u32 %s0, 4
      %s22 = int_to_ptr.hbm [resolvable:$true] %s21
      %s23 = sshll.u32 [#allocation3], 4
      %s24 = int_to_ptr.vmem [resolvable:$true] %s23
      %26 = dma.hbm_to_vmem [thread:$0]  %s22, 128, %s24, [#allocation4]
    $region5: #{tpu_custom_call.1} parent=1 // pred_fallthru
      _
    // Predicated region
    $region6: #{tpu_custom_call.1} parent=1 // pred_check
      _
    $region7: #{tpu_custom_call.1} parent=1 // pred_check_branch
      %28 = sbr.rel (0) target = $region9
    $region8: #{tpu_custom_call.1} parent=1 // pred_region
      %30 = vsyncadd [#allocation7], 0
      %s31 = sshll.u32 %s1, 4
      %s32 = int_to_ptr.hbm [resolvable:$true] %s31
      %s33 = sshll.u32 [#allocation6], 4
      %s34 = int_to_ptr.vmem [resolvable:$true] %s33
      %39 = dma.hbm_to_vmem [thread:$0]  %s32, 256, %s34, [#allocation7], 64, 64, 4
    $region9: #{tpu_custom_call.1} parent=1 // pred_fallthru
      _
    // Predicated region
    $region10: #{tpu_custom_call.1} parent=1 // pred_check
      _
    $region11: #{tpu_custom_call.1} parent=1 // pred_check_branch
      %41 = sbr.rel (0) target = $region13
    $region12: #{tpu_custom_call.1} parent=1 // pred_region
      _
    $region13: #{tpu_custom_call.1} parent=1 // pred_fallthru
      _
    // Predicated region
    $region14: #{tpu_custom_call.1} parent=1 // pred_check
      _
    $region15: #{tpu_custom_call.1} parent=1 // pred_check_branch
      %43 = sbr.rel (0) target = $region17
    $region16: #{tpu_custom_call.1} parent=1 // pred_region
      %45 = vsyncadd [#allocation7], 0
      %s46 = sshll.u32 %s3, 4
      %s47 = int_to_ptr.hbm [resolvable:$true] %s46
      %s48 = sshll.u32 [#allocation8], 4
      %s49 = int_to_ptr.vmem [resolvable:$true] %s48
      %54 = dma.hbm_to_vmem [thread:$0]  %s47, 1024, %s49, [#allocation7], 64, 64, 4
    $region17: #{tpu_custom_call.1} parent=1 // pred_fallthru
      _
    // Predicated region
    $region18: #{tpu_custom_call.1} parent=1 // pred_check
      _
    $region19: #{tpu_custom_call.1} parent=1 // pred_check_branch
      %56 = sbr.rel (0) target = $region21
    $region20: #{tpu_custom_call.1} parent=1 // pred_region
      _
    $region21: #{tpu_custom_call.1} parent=1 // pred_fallthru
      _
    // Predicated region
    $region22: #{tpu_custom_call.1} parent=1 // pred_check
      _
    $region23: #{tpu_custom_call.1} parent=1 // pred_check_branch
      %58 = sbr.rel (0) target = $region25
    $region24: #{tpu_custom_call.1} parent=1 // pred_region
      %60 = vsyncadd [#allocation10], 0
      %s61 = sshll.u32 %s5, 4
      %s62 = int_to_ptr.hbm [resolvable:$true] %s61
      %s63 = sshll.u32 [#allocation9], 4
      %s64 = int_to_ptr.vmem [resolvable:$true] %s63
      %69 = dma.hbm_to_vmem [thread:$0]  %s62, 1024, %s64, [#allocation10], 64, 64, 4
    $region25: #{tpu_custom_call.1} parent=1 // pred_fallthru
      _
    // Predicated region
    $region26: #{tpu_custom_call.1} parent=1 // pred_check
      _
    $region27: #{tpu_custom_call.1} parent=1 // pred_check_branch
      %71 = sbr.rel (0) target = $region29
    $region28: #{tpu_custom_call.1} parent=1 // pred_region
      _
    $region29: #{tpu_custom_call.1} parent=1 // pred_fallthru
      _
    // Predicated region
    $region30: #{tpu_custom_call.1} parent=1 // pred_check
      _
    $region31: #{tpu_custom_call.1} parent=1 // pred_check_branch
      %73 = sbr.rel (0) target = $region33
    $region32: #{tpu_custom_call.1} parent=1 // pred_region
      %75 = dma.done [#allocation4], 128
    $region33: #{tpu_custom_call.1} parent=1 // pred_fallthru
      _
    // Predicated region
    $region34: #{tpu_custom_call.1} parent=1 // pred_check
      _
    $region35: #{tpu_custom_call.1} parent=1 // pred_check_branch
      %77 = sbr.rel (0) target = $region37
    $region36: #{tpu_custom_call.1} parent=1 // pred_region
      %79 = dma.done [#allocation7], 256
    $region37: #{tpu_custom_call.1} parent=1 // pred_fallthru
      _
    // Predicated region
    $region38: #{tpu_custom_call.1} parent=1 // pred_check
      _
    $region39: #{tpu_custom_call.1} parent=1 // pred_check_branch
      %81 = sbr.rel (0) target = $region41
    $region40: #{tpu_custom_call.1} parent=1 // pred_region
      %83 = dma.done [#allocation7], 1024
    $region41: #{tpu_custom_call.1} parent=1 // pred_fallthru
      _
    // Predicated region
    $region42: #{tpu_custom_call.1} parent=1 // pred_check
      _
    $region43: #{tpu_custom_call.1} parent=1 // pred_check_branch
      %85 = sbr.rel (0) target = $region45
    $region44: #{tpu_custom_call.1} parent=1 // pred_region
      %87 = dma.done [#allocation10], 1024
    $region45: #{tpu_custom_call.1} parent=1 // pred_fallthru
      _
    %p89 = scmp.eq.s32.totalorder 0, 0
    // Predicated region
    $region46: #{tpu_custom_call.1} parent=1 // pred_check
      %p90 = pneg %p89
    $region47: #{tpu_custom_call.1} parent=1 // pred_check_branch
      %92 = sbr.rel (%p90) target = $region49
    $region48: #{tpu_custom_call.1} parent=1 // pred_region
      %93 = vst [vmem:[#allocation2] sm:$0xff] 0.0
    $region49: #{tpu_custom_call.1} parent=1 // pred_fallthru
      _
    %v94 = vld [vmem:[#allocation3] sm:$0xff]
    %v95 = vpack.c.bf16 %v94, %v94
    %v96 = vld [vmem:[#allocation2] sm:$0xff]
    %v97 = vld [vmem:[#allocation6] sm:$0xf]
    %v98 = vld [vmem:[#allocation6 + $0x4] sm:$0xf]
    %v99 = vld [vmem:[#allocation6 + $0x8] sm:$0xf]
    %v100 = vld [vmem:[#allocation6 + $0xc] sm:$0xf]
    %v105 = vunpack.c.l.b16 %v97
    %v106 = vunpack.c.l.b16 %v98
    %v107 = vunpack.c.l.b16 %v99
    %v108 = vunpack.c.l.b16 %v100
    %v109 = vpack.c.b16 %v106, %v105
    %v110 = vpack.c.b16 %v108, %v107
    %vm113 = vcmask 261120
    %v115 = vsel %vm113, %v95, 0
    %117 = vmatpush.bf16.msra.mxu0 0
    %118 = vmatpush.bf16.msra.mxu0 0
    %119 = vmatpush.bf16.msra.mxu0 0
    %120 = vmatpush.bf16.msra.mxu0 0
    %121 = vmatpush.bf16.msra.mxu0 0
    %122 = vmatpush.bf16.msra.mxu0 0
    %123 = vmatpush.bf16.msra.mxu0 %v110
    %124 = vmatpush.bf16.msra.mxu0 %v109
    %125 = vmatmul.bf16.gmra.mxu0 %v115
    %v126 = vpop.f32.mrf.mxu0
    %v127 = vadd.f32 0.0, %v126
    %v128 = vpop.f32.mrf.mxu0
    %129 = vdwg.mxu0
    %v130 = vadd.f32 %v96, %v127
    %131 = vst [vmem:[#allocation2] sm:$0xff] %v130
    // Predicated region
    $region50: #{tpu_custom_call.1} parent=1 // pred_check
      %p132 = pneg %p89
    $region51: #{tpu_custom_call.1} parent=1 // pred_check_branch
      %134 = sbr.rel (%p132) target = $region53
    $region52: #{tpu_custom_call.1} parent=1 // pred_region
      %v135 = vld [vmem:[#allocation2] sm:$0xff]
      %v136 = vld [vmem:[%s2] sm:$0x1]
      %v138 = vperm.slane %v136, 0
      %v140 = vadd.f32 %v135, %v138
      %v141 = vmax.f32 %v140, 0.0
      %v142 = vpack.c.bf16 %v141, %v141
      %v143 = vld [vmem:[#allocation8] sm:$0xf]
      %v144 = vld [vmem:[#allocation8 + $0x4] sm:$0xf]
      %v145 = vld [vmem:[#allocation8 + $0x8] sm:$0xf]
      %v146 = vld [vmem:[#allocation8 + $0xc] sm:$0xf]
      %v147 = vld [vmem:[#allocation8 + $0x10] sm:$0xf]
      %v148 = vld [vmem:[#allocation8 + $0x14] sm:$0xf]
      %v149 = vld [vmem:[#allocation8 + $0x18] sm:$0xf]
      %v150 = vld [vmem:[#allocation8 + $0x1c] sm:$0xf]
      %v151 = vld [vmem:[#allocation8 + $0x20] sm:$0xf]
      %v152 = vld [vmem:[#allocation8 + $0x24] sm:$0xf]
      %v153 = vld [vmem:[#allocation8 + $0x28] sm:$0xf]
      %v154 = vld [vmem:[#allocation8 + $0x2c] sm:$0xf]
      %v155 = vld [vmem:[#allocation8 + $0x30] sm:$0xf]
      %v156 = vld [vmem:[#allocation8 + $0x34] sm:$0xf]
      %v157 = vld [vmem:[#allocation8 + $0x38] sm:$0xf]
      %v158 = vld [vmem:[#allocation8 + $0x3c] sm:$0xf]
      %v159 = vld [vmem:[%s4] sm:$0x1]
      %v161 = vperm.slane %v159, 0
      %v179 = vunpack.c.l.b16 %v143
      %v180 = vunpack.c.l.b16 %v144
      %v181 = vunpack.c.l.b16 %v145
      %v182 = vunpack.c.l.b16 %v146
      %v183 = vunpack.c.l.b16 %v147
      %v184 = vunpack.c.l.b16 %v148
      %v185 = vunpack.c.l.b16 %v149
      %v186 = vunpack.c.l.b16 %v150
      %v187 = vunpack.c.l.b16 %v151
      %v188 = vunpack.c.l.b16 %v152
      %v189 = vunpack.c.l.b16 %v153
      %v190 = vunpack.c.l.b16 %v154
      %v191 = vunpack.c.l.b16 %v155
      %v192 = vunpack.c.l.b16 %v156
      %v193 = vunpack.c.l.b16 %v157
      %v194 = vunpack.c.l.b16 %v158
      %v195 = vpack.c.b16 %v180, %v179
      %v196 = vpack.c.b16 %v182, %v181
      %v197 = vpack.c.b16 %v184, %v183
      %v198 = vpack.c.b16 %v186, %v185
      %v199 = vpack.c.b16 %v188, %v187
      %v200 = vpack.c.b16 %v190, %v189
      %v201 = vpack.c.b16 %v192, %v191
      %v202 = vpack.c.b16 %v194, %v193
      %211 = vmatpush.bf16.msra.mxu0 %v202
      %212 = vmatpush.bf16.msra.mxu0 %v201
      %213 = vmatpush.bf16.msra.mxu0 %v200
      %214 = vmatpush.bf16.msra.mxu0 %v199
      %215 = vmatpush.bf16.msra.mxu0 %v198
      %216 = vmatpush.bf16.msra.mxu0 %v197
      %217 = vmatpush.bf16.msra.mxu0 %v196
      %218 = vmatpush.bf16.msra.mxu0 %v195
      %219 = vmatmul.bf16.gmra.mxu0 %v142
      %v220 = vpop.f32.mrf.mxu0
      %v221 = vadd.f32 %v161, %v220
      %v222 = vpop.f32.mrf.mxu0
      %223 = vdwg.mxu0
      %v224 = vmax.f32 %v221, 0.0
      %v225 = vpack.c.bf16 %v224, %v224
      %v226 = vld [vmem:[#allocation9] sm:$0xf]
      %v227 = vld [vmem:[#allocation9 + $0x4] sm:$0xf]
      %v228 = vld [vmem:[#allocation9 + $0x8] sm:$0xf]
      %v229 = vld [vmem:[#allocation9 + $0xc] sm:$0xf]
      %v230 = vld [vmem:[#allocation9 + $0x10] sm:$0xf]
      %v231 = vld [vmem:[#allocation9 + $0x14] sm:$0xf]
      %v232 = vld [vmem:[#allocation9 + $0x18] sm:$0xf]
      %v233 = vld [vmem:[#allocation9 + $0x1c] sm:$0xf]
      %v234 = vld [vmem:[#allocation9 + $0x20] sm:$0xf]
      %v235 = vld [vmem:[#allocation9 + $0x24] sm:$0xf]
      %v236 = vld [vmem:[#allocation9 + $0x28] sm:$0xf]
      %v237 = vld [vmem:[#allocation9 + $0x2c] sm:$0xf]
      %v238 = vld [vmem:[#allocation9 + $0x30] sm:$0xf]
      %v239 = vld [vmem:[#allocation9 + $0x34] sm:$0xf]
      %v240 = vld [vmem:[#allocation9 + $0x38] sm:$0xf]
      %v241 = vld [vmem:[#allocation9 + $0x3c] sm:$0xf]
      %v242 = vld [vmem:[%s6] sm:$0x1]
      %v244 = vperm.slane %v242, 0
      %v262 = vunpack.c.l.b16 %v226
      %v263 = vunpack.c.l.b16 %v227
      %v264 = vunpack.c.l.b16 %v228
      %v265 = vunpack.c.l.b16 %v229
      %v266 = vunpack.c.l.b16 %v230
      %v267 = vunpack.c.l.b16 %v231
      %v268 = vunpack.c.l.b16 %v232
      %v269 = vunpack.c.l.b16 %v233
      %v270 = vunpack.c.l.b16 %v234
      %v271 = vunpack.c.l.b16 %v235
      %v272 = vunpack.c.l.b16 %v236
      %v273 = vunpack.c.l.b16 %v237
      %v274 = vunpack.c.l.b16 %v238
      %v275 = vunpack.c.l.b16 %v239
      %v276 = vunpack.c.l.b16 %v240
      %v277 = vunpack.c.l.b16 %v241
      %v278 = vpack.c.b16 %v263, %v262
      %v279 = vpack.c.b16 %v265, %v264
      %v280 = vpack.c.b16 %v267, %v266
      %v281 = vpack.c.b16 %v269, %v268
      %v282 = vpack.c.b16 %v271, %v270
      %v283 = vpack.c.b16 %v273, %v272
      %v284 = vpack.c.b16 %v275, %v274
      %v285 = vpack.c.b16 %v277, %v276
      %294 = vmatpush.bf16.msra.mxu0 %v285
      %295 = vmatpush.bf16.msra.mxu0 %v284
      %296 = vmatpush.bf16.msra.mxu0 %v283
      %297 = vmatpush.bf16.msra.mxu0 %v282
      %298 = vmatpush.bf16.msra.mxu0 %v281
      %299 = vmatpush.bf16.msra.mxu0 %v280
      %300 = vmatpush.bf16.msra.mxu0 %v279
      %301 = vmatpush.bf16.msra.mxu0 %v278
      %302 = vmatmul.bf16.gmra.mxu0 %v225
      %v303 = vpop.f32.mrf.mxu0
      %v304 = vadd.f32 %v244, %v303
      %v305 = vpop.f32.mrf.mxu0
      %306 = vdwg.mxu0
      %v307 = vpack.c.bf16 %v304, %v304
      %308 = vst [vmem:[#allocation11] sm:$0xf] %v307
    $region53: #{tpu_custom_call.1} parent=1 // pred_fallthru
      _
    // Predicated region
    $region54: #{tpu_custom_call.1} parent=1 // pred_check
      _
    $region55: #{tpu_custom_call.1} parent=1 // pred_check_branch
      %310 = sbr.rel (0) target = $region57
    $region56: #{tpu_custom_call.1} parent=1 // pred_region
      %312 = vsyncadd [#allocation5], 0
      %s314 = sshll.u32 [#allocation11], 4
      %s315 = int_to_ptr.vmem [resolvable:$true] %s314
      %s316 = sshll.u32 %s7, 4
      %s317 = int_to_ptr.hbm [resolvable:$true] %s316
      %319 = dma.vmem_to_hbm [thread:$0]  %s315, 64, %s317, [#allocation5]
    $region57: #{tpu_custom_call.1} parent=1 // pred_fallthru
      _
    // Predicated region
    $region58: #{tpu_custom_call.1} parent=1 // pred_check
      _
    $region59: #{tpu_custom_call.1} parent=1 // pred_check_branch
      %321 = sbr.rel (0) target = $region61
    $region60: #{tpu_custom_call.1} parent=1 // pred_region
      %323 = dma.done [#allocation5], 64
    $region61: #{tpu_custom_call.1} parent=1 // pred_fallthru
      _
    %324 = vsyncpa [#allocation4], 1
    %325 = vsyncpa [#allocation7], 1
    %326 = vsyncpa [#allocation10], 1
    %327 = vsyncpa [#allocation5], 1

</llo_original>
